<compile_context>
chip_gen: v7x
topology: tpu7x:2x2x1
jax: 0.10.0
libtpu: 0.0.40
codegen_flags: <defaults>
</compile_context>

<pallas_src>
import math

import jax
import jax.numpy as jnp
from jax.experimental import pallas as pl
from jax.experimental.pallas import tpu as pltpu


_TARGET_BLOCK_BYTES = 2 * 1024 * 1024   # ~2 MiB per buffer per tile
_MIN_PALLAS_BYTES = 256 * 1024          # below this, plain JAX is faster


def _sublane_quantum(itemsize):
    """Native sublane tile (rows) for a dtype: 8 f32, 16 bf16, 32 int8/fp8."""
    return {1: 32, 2: 16}.get(int(itemsize), 8)


def _pick_2d_layout(total_elems, itemsize):
    """Pick (rows, lane, row_tile) for a flattened elementwise streaming op.

    `total_elems` must be a multiple of 128 (caller pads). Picks a lane-dense
    last dim (multiple of 128, as wide as divides evenly) and a row tile that
    (a) is a multiple of the dtype's native sublane quantum, (b) keeps the
    block around _TARGET_BLOCK_BYTES, and (c) leaves >= 4 grid steps when
    there is enough work (v7x megacore sharding + pipelining).
    """
    sub = _sublane_quantum(itemsize)
    for lane in (1024, 512, 256, 128):
        if total_elems % lane != 0:
            continue
        rows = total_elems // lane
        if rows < sub:
            return rows, lane, rows  # full array as one (legal) block
        max_tr = max(sub, (_TARGET_BLOCK_BYTES // (lane * itemsize)) // sub * sub)
        if rows >= 4 * sub:
            # Keep at least ~4 grid steps for mid-size inputs.
            max_tr = min(max_tr, max(sub, (rows // 4) // sub * sub))
        if rows <= max_tr:
            return rows, lane, rows
        # Prefer a tile that evenly divides rows (unmasked stores everywhere).
        cand = max_tr
        while cand >= sub:
            if rows % cand == 0:
                return rows, lane, cand
            cand -= sub
        return rows, lane, max_tr  # masked final block
    # Unreachable: caller guarantees total_elems % 128 == 0.
    return 1, total_elems, 1


def _make_kernel(scale, fn):
    scale = float(scale)  # baked into the kernel as an immediate

    def kernel(x_ref, o_ref):
        x = x_ref[...]
        y = fn(x) if fn is not None else x
        o_ref[...] = (y * scale).astype(o_ref.dtype)

    return kernel


def scaled_elementwise(x, scale, fn=None, out_dtype=None,
                       min_pallas_bytes=_MIN_PALLAS_BYTES):
    """(fn(x) if fn is not None else x) * scale as a lane-dense Pallas pass.

    `fn` (if given) must be elementwise / shape-preserving: it is traced per
    flattened (row_tile, lane) block.
    """
    out_dtype = x.dtype if out_dtype is None else out_dtype
    orig_shape = x.shape
    total = math.prod(orig_shape) if orig_shape else 1
    itemsize = jnp.dtype(x.dtype).itemsize
    nbytes = total * itemsize

    if total == 0 or nbytes < min_pallas_bytes:
        # Tiny tensor: pallas_call launch overhead dominates; let XLA fuse.
        y = fn(x) if fn is not None else x
        return (y * scale).astype(out_dtype)

    # Flatten to a lane-dense 2D slab; pad the tail so the last dim is a
    # multiple of 128 (padded elements are computed then sliced off).
    x_flat = x.reshape(total)
    pad = (-total) % 128
    if pad:
        x_flat = jnp.pad(x_flat, (0, pad))
    rows, lane, tr = _pick_2d_layout(total + pad, itemsize)
    x2 = x_flat.reshape(rows, lane)

    out2 = pl.pallas_call(
        _make_kernel(scale, fn),
        out_shape=jax.ShapeDtypeStruct((rows, lane), out_dtype),
        grid_spec=pltpu.PrefetchScalarGridSpec(
            num_scalar_prefetch=0,
            grid=(pl.cdiv(rows, tr),),
            in_specs=[pl.BlockSpec((tr, lane), lambda i: (i, 0))],
            out_specs=pl.BlockSpec((tr, lane), lambda i: (i, 0)),
        ),
        compiler_params=pltpu.CompilerParams(
            dimension_semantics=("parallel",),
        ),
    )(x2)

    out_flat = out2.reshape(rows * lane)
    if pad:
        out_flat = out_flat[:total]
    return out_flat.reshape(orig_shape)


class Scale:
    """JAX/Pallas port of soundstorm_pytorch.Scale: fn(x, **kwargs) * scale.

    If `elementwise=True` (and no kwargs), the wrapped fn is traced inside the
    Pallas kernel so fn(x)*scale is one HBM read + one HBM write. Otherwise fn
    runs as plain JAX and the scalar multiply is left for XLA to fuse into
    fn's epilogue (cheaper than a standalone Pallas scale pass).
    """

    def __init__(self, scale, fn, elementwise=False,
                 min_pallas_bytes=_MIN_PALLAS_BYTES):
        self.scale = float(scale)
        self.fn = fn
        self.elementwise = elementwise
        self.min_pallas_bytes = min_pallas_bytes

    def __call__(self, x, **kwargs):
        if self.elementwise and not kwargs:
            out_sds = jax.eval_shape(self.fn, x)
            if out_sds.shape == x.shape:
                return scaled_elementwise(
                    x, self.scale, fn=self.fn, out_dtype=out_sds.dtype,
                    min_pallas_bytes=self.min_pallas_bytes)
        # TODO(synk): non-elementwise wrapped fns (attention / FeedForward with
        # matmuls, reductions) cannot be fused into the flattened scaling
        # kernel; they run in plain JAX and XLA fuses the multiply.
        y = self.fn(x, **kwargs)
        return y * self.scale


if __name__ == "__main__":
    key = jax.random.PRNGKey(0)
    k1, k2, k3 = jax.random.split(key, 3)

    scale = 0.5
    fn = jax.nn.gelu  # tanh-approximate by default -> EUP-friendly on v5e

    # --- 1) Fused Pallas path on the demo shape (forced past the cutoff). ---
    B, S, D = 2, 8, 32
    x = jax.random.normal(k1, (B, S, D), dtype=jnp.float32)
    ref = fn(x) * scale
    fused = Scale(scale, fn, elementwise=True, min_pallas_bytes=0)
    out_fused = jax.block_until_ready(jax.jit(fused)(x))
    assert out_fused.shape == x.shape and out_fused.dtype == x.dtype
    assert jnp.allclose(out_fused, ref, atol=1e-5, rtol=1e-5)

    # --- 2) Generic path: fn in plain JAX, multiply fused by XLA. ---
    generic = Scale(scale, fn)
    out_generic = jax.block_until_ready(jax.jit(generic)(x))
    assert jnp.allclose(out_generic, ref, atol=1e-5, rtol=1e-5)

    # --- 3) Padded-tail path: total not a multiple of 128. ---
    x_odd = jax.random.normal(k2, (3, 7, 5), dtype=jnp.float32)
    out_odd = jax.block_until_ready(fused(x_odd))
    assert out_odd.shape == x_odd.shape
    assert jnp.allclose(out_odd, fn(x_odd) * scale, atol=1e-5, rtol=1e-5)

    # --- 4) bf16 path: dtype-aware sublane quantum + multi-step grid. ---
    x_bf = jax.random.normal(k3, (4, 128, 256), dtype=jnp.bfloat16)
    out_bf = jax.block_until_ready(fused(x_bf))
    assert out_bf.shape == x_bf.shape and out_bf.dtype == jnp.bfloat16
    ref_bf = (fn(x_bf.astype(jnp.float32)) * scale).astype(jnp.bfloat16)
    assert jnp.allclose(out_bf.astype(jnp.float32),
                        ref_bf.astype(jnp.float32), atol=2e-2, rtol=2e-2)

    print("KERNEL_OK")
</pallas_src>

<mosaic_0001>
module attributes {stable_mosaic.version = 11 : i64} {
  func.func @kernel(%arg0: i32, %arg1: memref<1x512xf32, #tpu.memory_space<vmem>>, %arg2: memref<1x512xf32, #tpu.memory_space<vmem>>) attributes {dimension_semantics = [#tpu.dimension_semantics<parallel>], iteration_bounds = array<i64: 1>, scalar_prefetch = 0 : i64, scratch_operands = 0 : i64, tpu.core_type = #tpu.core_type<tc>, window_params = [{transform_indices = @transform_0, window_bounds = array<i64: 1, 512>}, {transform_indices = @transform_1, window_bounds = array<i64: 1, 512>}]} {
    %c0 = arith.constant 0 : index
    %c0_0 = arith.constant 0 : index
    %0 = vector.load %arg1[%c0, %c0_0] : memref<1x512xf32, #tpu.memory_space<vmem>>, vector<1x512xf32>
    %1 = arith.mulf %0, %0 : vector<1x512xf32>
    %2 = arith.mulf %0, %1 : vector<1x512xf32>
    %cst = arith.constant 4.471500e-02 : f32
    %3 = vector.broadcast %cst : f32 to vector<1x512xf32>
    %4 = arith.mulf %3, %2 : vector<1x512xf32>
    %5 = arith.addf %0, %4 : vector<1x512xf32>
    %cst_1 = arith.constant 0.797884583 : f32
    %6 = vector.broadcast %cst_1 : f32 to vector<1x512xf32>
    %7 = arith.mulf %6, %5 : vector<1x512xf32>
    %8 = math.tanh %7 : vector<1x512xf32>
    %cst_2 = arith.constant 1.000000e+00 : f32
    %9 = vector.broadcast %cst_2 : f32 to vector<1x512xf32>
    %10 = arith.addf %9, %8 : vector<1x512xf32>
    %cst_3 = arith.constant 5.000000e-01 : f32
    %11 = vector.broadcast %cst_3 : f32 to vector<1x512xf32>
    %12 = arith.mulf %11, %10 : vector<1x512xf32>
    %13 = arith.mulf %0, %12 : vector<1x512xf32>
    %cst_4 = arith.constant 5.000000e-01 : f32
    %14 = vector.broadcast %cst_4 : f32 to vector<1x512xf32>
    %15 = arith.mulf %13, %14 : vector<1x512xf32>
    %c0_5 = arith.constant 0 : index
    %c0_6 = arith.constant 0 : index
    %16 = vector.load %arg2[%c0_5, %c0_6] : memref<1x512xf32, #tpu.memory_space<vmem>>, vector<1x512xf32>
    tpu.vector_store %arg2[%c0_5, %c0_6], %15 {strides = array<i32>} : memref<1x512xf32, #tpu.memory_space<vmem>>, vector<1x512xf32>,
    return
  }
  func.func @transform_0(%arg0: i32) -> (i32, i32) {
    %c0_i32 = arith.constant 0 : i32
    %c0_i32_0 = arith.constant 0 : i32
    return %arg0, %c0_i32 : i32, i32
  }
  func.func @transform_1(%arg0: i32) -> (i32, i32) {
    %c0_i32 = arith.constant 0 : i32
    %c0_i32_0 = arith.constant 0 : i32
    return %arg0, %c0_i32 : i32, i32
  }
}

</mosaic_0001>

<llo_original>
// kernel: _unnamed_function_.1
$region0: #{_unnamed_function_.1}
  #allocation0 [shape = 'u32[]', space=smem, size = 0x4, offset = 0x4, fixed_abs, tag = 'smem constant byte address 0x4 - core index']
  #allocation1 [shape = 'u32[144,128]{1,0:T(1,128)}', space=vmem, size = 0x12000, scoped, tag = 'internal scratch']
  %s0 = inlined_call_operand.vmem [shape: f32[1,512], index: 0, kind: input, shape index: {}]
  %s1 = inlined_call_operand.vmem [shape: f32[1,512], index: 1, kind: output, shape index: {}]
  %s2 = sld [smem:[#allocation0]]
  $region14: #{_unnamed_function_.1} parent=0
    _
  %s4 = ssub.s32 1, %s2
  %s5 = scalar_select 0, %s4, %s2
  // Predicated region
  $region2: #{_unnamed_function_.1} parent=0 // pred_check
    _
  $region3: #{_unnamed_function_.1} parent=0 // pred_check_branch
    %7 = sbr.rel (0) target = $region5
  $region4: #{_unnamed_function_.1} parent=0 // pred_region
    _
  $region5: #{_unnamed_function_.1} parent=0 // pred_fallthru
    _
  %v8 = vld [vmem:[%s0] sm:$0xf]
  %v9 = vmul.f32 %v8, %v8
  %v10 = vmul.f32 %v8, %v9
  %v11 = vmul.f32 %v10, 0.044715
  %v12 = vadd.f32 %v8, %v11
  %v13 = vmul.f32 %v12, 0.7978846
  %v14 = vtanh.pop %v13
  %v15 = vadd.f32 %v14, 1.0
  %v16 = vmul.f32 %v15, 0.5
  %v17 = vmul.f32 %v8, %v16
  %v18 = vmul.f32 %v17, 0.5
  %v19 = vlaneseq
  %vm20 = vcmp.ge.s32.totalorder %v19, 0
  %vm21 = vcmp.lt.s32.totalorder %v19, 512
  %vm22 = vmand %vm20, %vm21
  %23 = vst.msk [vmem:[%s1] sm:$0xf] %vm22, %v18
  // Predicated region
  $region6: #{_unnamed_function_.1} parent=0 // pred_check
    _
  $region7: #{_unnamed_function_.1} parent=0 // pred_check_branch
    %25 = sbr.rel (0) target = $region9
  $region8: #{_unnamed_function_.1} parent=0 // pred_region
    _
  $region9: #{_unnamed_function_.1} parent=0 // pred_fallthru
    _
  // Predicated region
  $region10: #{_unnamed_function_.1} parent=0 // pred_check
    _
  $region11: #{_unnamed_function_.1} parent=0 // pred_check_branch
    %27 = sbr.rel (0) target = $region13
  $region12: #{_unnamed_function_.1} parent=0 // pred_region
    _
  $region13: #{_unnamed_function_.1} parent=0 // pred_fallthru
    _

</llo_original>
